<compile_context>
chip_gen: v5e
topology: v5e:2x2
jax: 0.10.0
libtpu: 0.0.40
codegen_flags: <defaults>
</compile_context>

<pallas_src>
import math
from functools import partial

import jax
import jax.numpy as jnp
from jax.experimental import pallas as pl
from jax.experimental.pallas import tpu as pltpu

# ---- small config consistent with the module -------------------------------
B = 2          # batch
S = 8          # sequence length
D_HIDN = 32    # config.d_hidn
N_HEAD = 4     # config.n_head
D_HEAD = 8     # config.d_head   (n_head * d_head == d_hidn)
D_PROJ = N_HEAD * D_HEAD
D_FF = 4 * D_HIDN
LN_EPS = 1e-12                     # config.layer_norm_epsilon


def _layer_norm(x, gamma, beta):
    # torch.nn.LayerNorm: biased variance over the last dim.
    mean = jnp.mean(x, axis=-1, keepdims=True)
    var = jnp.mean((x - mean) ** 2, axis=-1, keepdims=True)
    return (x - mean) * jax.lax.rsqrt(var + LN_EPS) * gamma + beta


def _erf(x):
    # Abramowitz–Stegun 7.1.26 polynomial erf, |abs err| < 1.5e-7 — matches PyTorch's
    # exact-erf GELU to ~f32 precision using only exp/mul/add/div (always lowers).
    a1, a2, a3, a4, a5 = 0.254829592, -0.284496736, 1.421413741, -1.453152027, 1.061405429
    p = 0.3275911
    ax = jnp.abs(x)
    t = 1.0 / (1.0 + p * ax)
    poly = ((((a5 * t + a4) * t + a3) * t + a2) * t + a1) * t
    y = 1.0 - poly * jnp.exp(-ax * ax)
    return jnp.where(x >= 0.0, y, -y)


def _gelu(x):
    # PyTorch F.gelu default (exact erf formulation).
    return 0.5 * x * (1.0 + _erf(x * (1.0 / math.sqrt(2.0))))


def encoder_layer_kernel(
    x_ref, code_ref, hm_ref,
    wqkv_ref, bqkv_ref, wo_ref, bo_ref,
    g1_ref, be1_ref,
    w1_ref, bf1_ref, w2_ref, bf2_ref,
    g2_ref, be2_ref,
    out_ref, attn_ref,
):
    x = x_ref[...]                      # (B*S, D)
    code = code_ref[...]                # (H*B*S, B*S)  0=keep, 1=pad, 2=cross-batch
    hm = hm_ref[...]                    # (H*B*S, D_PROJ) per-head channel indicator

    bs, _ = x.shape
    n_head = hm.shape[0] // bs
    d_proj = hm.shape[1]
    d_head = d_proj // n_head
    scale = 1.0 / math.sqrt(d_head)

    # ---- MultiHeadAttention -------------------------------------------------
    # Fused QKV projection: one MXU push.
    qkv = jnp.dot(x, wqkv_ref[...], preferred_element_type=jnp.float32) + bqkv_ref[...]
    q = qkv[:, :d_proj]
    k = qkv[:, d_proj:2 * d_proj]
    v = qkv[:, 2 * d_proj:]

    # All-head scores in one matmul: replicate Q along sublanes per head and zero
    # the channels outside that head; contraction over all channels then equals the
    # per-head contraction.
    q_rep = jnp.concatenate([q] * n_head, axis=0)          # (H*B*S, D_PROJ)
    q_m = q_rep * hm

    scores = jax.lax.dot_general(
        q_m, k, (((1,), (1,)), ((), ())),
        preferred_element_type=jnp.float32) * scale        # (H*B*S, B*S)
    scores = jnp.where(code == 1.0, -1e9, scores)          # padding mask (masked_fill -1e9)
    scores = jnp.where(code == 2.0, -jnp.inf, scores)      # other-batch blocks -> prob 0

    # One softmax over the whole slab (row max is always finite: own-batch block
    # entries are never -inf).
    scores = scores - jnp.max(scores, axis=-1, keepdims=True)
    e = jnp.exp(scores)
    denom = jnp.sum(e, axis=-1, keepdims=True)
    p = e * pl.reciprocal(denom, approx=True)              # softmax via EUP reciprocal

    attn_ref[...] = p                                      # single lane-dense store

    # Context: cross-batch probabilities are exactly 0, so P @ V over the full
    # (B*S) key axis is safe; mask to the head's channels and sum the head blocks.
    t = jnp.dot(p, v, preferred_element_type=jnp.float32) * hm   # (H*B*S, D_PROJ)
    ctx = t[0:bs]
    for h in range(1, n_head):                             # 3 static sublane-slice adds
        ctx = ctx + t[h * bs:(h + 1) * bs]

    att_out = jnp.dot(ctx, wo_ref[...], preferred_element_type=jnp.float32) + bo_ref[...]

    # ---- Add & LayerNorm 1 --------------------------------------------------
    h1 = _layer_norm(x + att_out, g1_ref[...], be1_ref[...])

    # ---- PoswiseFeedForwardNet (Conv1d k=1 == per-position Linear) ----------
    ff = _gelu(jnp.dot(h1, w1_ref[...], preferred_element_type=jnp.float32) + bf1_ref[...])
    ff = jnp.dot(ff, w2_ref[...], preferred_element_type=jnp.float32) + bf2_ref[...]

    # ---- Add & LayerNorm 2 --------------------------------------------------
    out = _layer_norm(ff + h1, g2_ref[...], be2_ref[...])
    out_ref[...] = out.astype(out_ref.dtype)


@partial(jax.jit, static_argnames=("n_head",))
def encoder_layer(x, attn_mask, params, *, n_head=N_HEAD):
    """x: (B, S, D) f32; attn_mask: (B, S, S) bool (True = masked key position)."""
    b, s, d = x.shape
    bs = b * s
    wq, bq, wk, bk, wv, bv, wo, bo, g1, be1, w1, bf1, w2, bf2, g2, be2 = params
    d_proj = wq.shape[1]
    d_head = d_proj // n_head

    # Fold batch into the sublane axis — single kernel invocation.
    x2 = x.reshape(bs, d)

    # Fused QKV weight / bias (host-side, one-time concat).
    wqkv = jnp.concatenate([wq, wk, wv], axis=1)           # (d, 3*d_proj)
    bqkv = jnp.concatenate([bq, bk, bv], axis=1)           # (1, 3*d_proj)

    # Per-head channel indicator replicated per (head, position): (n_head*bs, d_proj).
    hm_h = (jnp.arange(d_proj)[None, :] // d_head
            == jnp.arange(n_head)[:, None]).astype(jnp.float32)
    hm = jnp.repeat(hm_h, bs, axis=0)

    # Mask code on the (head*batch*seq, batch*seq) score layout:
    #   0 = keep, 1 = padding (-1e9, as in masked_fill), 2 = cross-batch (-inf).
    # This is pure layout expansion (the module itself repeats the mask per head).
    rows = jnp.arange(bs)
    b_of = rows // s
    i_of = rows % s
    same_batch = b_of[:, None] == b_of[None, :]
    pad = attn_mask[b_of[:, None], i_of[:, None], i_of[None, :]]       # (bs, bs)
    code16 = jnp.where(~same_batch, 2.0, jnp.where(pad, 1.0, 0.0)).astype(jnp.float32)
    code = jnp.tile(code16, (n_head, 1))                   # (n_head*bs, bs)

    inputs = (x2, code, hm, wqkv, bqkv, wo, bo, g1, be1, w1, bf1, w2, bf2, g2, be2)

    def full_spec(a):
        return pl.BlockSpec(a.shape, lambda i: (0, 0))     # all operands are 2-D

    out_shape = [
        jax.ShapeDtypeStruct((bs, d), jnp.float32),              # flat ffn_outputs
        jax.ShapeDtypeStruct((n_head * bs, bs), jnp.float32),    # flat attn_prob slab
    ]
    out_specs = [
        pl.BlockSpec((bs, d), lambda i: (0, 0)),
        pl.BlockSpec((n_head * bs, bs), lambda i: (0, 0)),
    ]

    out2, p_flat = pl.pallas_call(
        encoder_layer_kernel,
        grid=(1,),
        in_specs=[full_spec(a) for a in inputs],
        out_specs=out_specs,
        out_shape=out_shape,
        compiler_params=pltpu.CompilerParams(dimension_semantics=("arbitrary",)),
    )(*inputs)

    ffn_outputs = out2.reshape(b, s, d)
    # Extract the per-(batch, head) diagonal S x S blocks of the probability slab.
    p5 = p_flat.reshape(n_head, b, s, b, s)
    bidx = jnp.arange(b)
    attn_prob = p5[:, bidx, :, bidx, :]                    # -> (b, n_head, s, s)
    return ffn_outputs, attn_prob


def init_params(key):
    ks = jax.random.split(key, 12)

    def lin(k, din, dout, scale=None):
        scale = scale if scale is not None else 1.0 / math.sqrt(din)
        return jax.random.normal(k, (din, dout), jnp.float32) * scale

    def bias(k, n):
        return jax.random.normal(k, (1, n), jnp.float32) * 0.01

    wq = lin(ks[0], D_HIDN, D_PROJ); bq = bias(ks[1], D_PROJ)
    wk = lin(ks[2], D_HIDN, D_PROJ); bk = bias(ks[3], D_PROJ)
    wv = lin(ks[4], D_HIDN, D_PROJ); bv = bias(ks[5], D_PROJ)
    wo = lin(ks[6], D_PROJ, D_HIDN); bo = bias(ks[7], D_HIDN)
    g1 = jnp.ones((1, D_HIDN), jnp.float32); be1 = jnp.zeros((1, D_HIDN), jnp.float32)
    w1 = lin(ks[8], D_HIDN, D_FF);  bf1 = bias(ks[9], D_FF)     # Conv1d(d_hidn, 4*d_hidn, 1)
    w2 = lin(ks[10], D_FF, D_HIDN); bf2 = bias(ks[11], D_HIDN)  # Conv1d(4*d_hidn, d_hidn, 1)
    g2 = jnp.ones((1, D_HIDN), jnp.float32); be2 = jnp.zeros((1, D_HIDN), jnp.float32)

    return [wq, bq, wk, bk, wv, bv, wo, bo, g1, be1, w1, bf1, w2, bf2, g2, be2]


if __name__ == "__main__":
    key = jax.random.PRNGKey(0)
    k_x, k_p = jax.random.split(key)

    x = jax.random.normal(k_x, (B, S, D_HIDN), jnp.float32)

    # Padding attention mask (True = masked key position), like get_attn_pad_mask:
    # batch 0 has no padding, batch 1 has its last 2 key positions padded.
    seq_lens = jnp.array([S, S - 2], dtype=jnp.int32)
    key_pos = jnp.arange(S)[None, None, :]                      # (1, 1, S)
    attn_mask = key_pos >= seq_lens[:, None, None]              # (B, 1, S)
    attn_mask = jnp.broadcast_to(attn_mask, (B, S, S))          # (B, S, S) bool

    params = init_params(k_p)

    ffn_outputs, attn_prob = encoder_layer(x, attn_mask, params)
    jax.block_until_ready((ffn_outputs, attn_prob))

    assert ffn_outputs.shape == (B, S, D_HIDN)
    assert attn_prob.shape == (B, N_HEAD, S, S)
    assert bool(jnp.isfinite(ffn_outputs).all())
    assert bool(jnp.isfinite(attn_prob).all())
    print("KERNEL_OK")
</pallas_src>

<mosaic_0001>
module attributes {stable_mosaic.version = 11 : i64} {
  func.func @encoder_layer_kernel(%arg0: i32, %arg1: memref<16x32xf32, #tpu.memory_space<vmem>>, %arg2: memref<64x16xf32, #tpu.memory_space<vmem>>, %arg3: memref<64x32xf32, #tpu.memory_space<vmem>>, %arg4: memref<32x96xf32, #tpu.memory_space<vmem>>, %arg5: memref<1x96xf32, #tpu.memory_space<vmem>>, %arg6: memref<32x32xf32, #tpu.memory_space<vmem>>, %arg7: memref<1x32xf32, #tpu.memory_space<vmem>>, %arg8: memref<1x32xf32, #tpu.memory_space<vmem>>, %arg9: memref<1x32xf32, #tpu.memory_space<vmem>>, %arg10: memref<32x128xf32, #tpu.memory_space<vmem>>, %arg11: memref<1x128xf32, #tpu.memory_space<vmem>>, %arg12: memref<128x32xf32, #tpu.memory_space<vmem>>, %arg13: memref<1x32xf32, #tpu.memory_space<vmem>>, %arg14: memref<1x32xf32, #tpu.memory_space<vmem>>, %arg15: memref<1x32xf32, #tpu.memory_space<vmem>>, %arg16: memref<16x32xf32, #tpu.memory_space<vmem>>, %arg17: memref<64x16xf32, #tpu.memory_space<vmem>>) attributes {dimension_semantics = [#tpu.dimension_semantics<arbitrary>], iteration_bounds = array<i64: 1>, scalar_prefetch = 0 : i64, scratch_operands = 0 : i64, tpu.core_type = #tpu.core_type<tc>, window_params = [{pipeline_mode = #tpu.pipeline_mode<synchronous>, transform_indices = @transform_0, window_bounds = array<i64: 16, 32>}, {pipeline_mode = #tpu.pipeline_mode<synchronous>, transform_indices = @transform_1, window_bounds = array<i64: 64, 16>}, {pipeline_mode = #tpu.pipeline_mode<synchronous>, transform_indices = @transform_2, window_bounds = array<i64: 64, 32>}, {pipeline_mode = #tpu.pipeline_mode<synchronous>, transform_indices = @transform_3, window_bounds = array<i64: 32, 96>}, {pipeline_mode = #tpu.pipeline_mode<synchronous>, transform_indices = @transform_4, window_bounds = array<i64: 1, 96>}, {pipeline_mode = #tpu.pipeline_mode<synchronous>, transform_indices = @transform_5, window_bounds = array<i64: 32, 32>}, {pipeline_mode = #tpu.pipeline_mode<synchronous>, transform_indices = @transform_6, window_bounds = array<i64: 1, 32>}, {pipeline_mode = #tpu.pipeline_mode<synchronous>, transform_indices = @transform_7, window_bounds = array<i64: 1, 32>}, {pipeline_mode = #tpu.pipeline_mode<synchronous>, transform_indices = @transform_8, window_bounds = array<i64: 1, 32>}, {pipeline_mode = #tpu.pipeline_mode<synchronous>, transform_indices = @transform_9, window_bounds = array<i64: 32, 128>}, {pipeline_mode = #tpu.pipeline_mode<synchronous>, transform_indices = @transform_10, window_bounds = array<i64: 1, 128>}, {pipeline_mode = #tpu.pipeline_mode<synchronous>, transform_indices = @transform_11, window_bounds = array<i64: 128, 32>}, {pipeline_mode = #tpu.pipeline_mode<synchronous>, transform_indices = @transform_12, window_bounds = array<i64: 1, 32>}, {pipeline_mode = #tpu.pipeline_mode<synchronous>, transform_indices = @transform_13, window_bounds = array<i64: 1, 32>}, {pipeline_mode = #tpu.pipeline_mode<synchronous>, transform_indices = @transform_14, window_bounds = array<i64: 1, 32>}, {pipeline_mode = #tpu.pipeline_mode<synchronous>, transform_indices = @transform_15, window_bounds = array<i64: 16, 32>}, {pipeline_mode = #tpu.pipeline_mode<synchronous>, transform_indices = @transform_16, window_bounds = array<i64: 64, 16>}]} {
    %c0 = arith.constant 0 : index
    %c0_0 = arith.constant 0 : index
    %0 = vector.load %arg1[%c0, %c0_0] : memref<16x32xf32, #tpu.memory_space<vmem>>, vector<16x32xf32>
    %c0_1 = arith.constant 0 : index
    %c0_2 = arith.constant 0 : index
    %1 = vector.load %arg2[%c0_1, %c0_2] : memref<64x16xf32, #tpu.memory_space<vmem>>, vector<64x16xf32>
    %c0_3 = arith.constant 0 : index
    %c0_4 = arith.constant 0 : index
    %2 = vector.load %arg3[%c0_3, %c0_4] : memref<64x32xf32, #tpu.memory_space<vmem>>, vector<64x32xf32>
    %c0_5 = arith.constant 0 : index
    %c0_6 = arith.constant 0 : index
    %3 = vector.load %arg4[%c0_5, %c0_6] : memref<32x96xf32, #tpu.memory_space<vmem>>, vector<32x96xf32>
    %cst = arith.constant dense<0.000000e+00> : vector<16x96xf32>
    %4 = tpu.matmul %0, %3, %cst {dimension_numbers = #tpu.dot_dimension_numbers<[1], [0], [0], [1], [0, 0, 1, 1], [], []>} : vector<16x32xf32>, vector<32x96xf32>, vector<16x96xf32> -> vector<16x96xf32>
    %c0_7 = arith.constant 0 : index
    %c0_8 = arith.constant 0 : index
    %5 = vector.load %arg5[%c0_7, %c0_8] : memref<1x96xf32, #tpu.memory_space<vmem>>, vector<1x96xf32>
    %6 = vector.broadcast %5 : vector<1x96xf32> to vector<16x96xf32>
    %7 = arith.addf %4, %6 : vector<16x96xf32>
    %8 = vector.extract_strided_slice %7 {offsets = [0, 0], sizes = [16, 32], strides = [1, 1]} : vector<16x96xf32> to vector<16x32xf32>
    %9 = vector.extract_strided_slice %7 {offsets = [0, 32], sizes = [16, 32], strides = [1, 1]} : vector<16x96xf32> to vector<16x32xf32>
    %10 = vector.extract_strided_slice %7 {offsets = [0, 64], sizes = [16, 32], strides = [1, 1]} : vector<16x96xf32> to vector<16x32xf32>
    %11 = tpu.concatenate %8, %8, %8, %8 in 0 : vector<16x32xf32>, vector<16x32xf32>, vector<16x32xf32>, vector<16x32xf32> -> vector<64x32xf32>
    %12 = arith.mulf %11, %2 : vector<64x32xf32>
    %cst_9 = arith.constant dense<0.000000e+00> : vector<64x16xf32>
    %13 = tpu.matmul %12, %9, %cst_9 {dimension_numbers = #tpu.dot_dimension_numbers<[1], [1], [0], [0], [0, 0, 1, 0], [], []>} : vector<64x32xf32>, vector<16x32xf32>, vector<64x16xf32> -> vector<64x16xf32>
    %cst_10 = arith.constant 0.353553385 : f32
    %14 = vector.broadcast %cst_10 : f32 to vector<64x16xf32>
    %15 = arith.mulf %13, %14 : vector<64x16xf32>
    %cst_11 = arith.constant 1.000000e+00 : f32
    %16 = vector.broadcast %cst_11 : f32 to vector<64x16xf32>
    %17 = arith.cmpf oeq, %1, %16 : vector<64x16xf32>
    %cst_12 = arith.constant -1.000000e+09 : f32
    %18 = vector.broadcast %cst_12 : f32 to vector<64x16xf32>
    %19 = arith.select %17, %18, %15 : vector<64x16xi1>, vector<64x16xf32>
    %cst_13 = arith.constant 2.000000e+00 : f32
    %20 = vector.broadcast %cst_13 : f32 to vector<64x16xf32>
    %21 = arith.cmpf oeq, %1, %20 : vector<64x16xf32>
    %cst_14 = arith.constant 0xFF800000 : f32
    %22 = vector.broadcast %cst_14 : f32 to vector<64x16xf32>
    %23 = arith.select %21, %22, %19 : vector<64x16xi1>, vector<64x16xf32>
    %cst_15 = arith.constant dense<0xFF800000> : vector<64xf32>
    %24 = vector.multi_reduction <maximumf>, %23, %cst_15 [1] : vector<64x16xf32> to vector<64xf32>
    %25 = vector.shape_cast %24 : vector<64xf32> to vector<64x1xf32>
    %26 = vector.broadcast %25 : vector<64x1xf32> to vector<64x16xf32>
    %27 = arith.subf %23, %26 : vector<64x16xf32>
    %28 = math.exp %27 : vector<64x16xf32>
    %cst_16 = arith.constant dense<0.000000e+00> : vector<64xf32>
    %29 = vector.multi_reduction <add>, %28, %cst_16 [1] : vector<64x16xf32> to vector<64xf32>
    %30 = vector.shape_cast %29 : vector<64xf32> to vector<64x1xf32>
    %31 = tpu.reciprocal %30 {approx = true} : vector<64x1xf32> -> vector<64x1xf32>
    %32 = vector.broadcast %31 : vector<64x1xf32> to vector<64x16xf32>
    %33 = arith.mulf %28, %32 : vector<64x16xf32>
    %c0_17 = arith.constant 0 : index
    %c0_18 = arith.constant 0 : index
    %34 = vector.load %arg17[%c0_17, %c0_18] : memref<64x16xf32, #tpu.memory_space<vmem>>, vector<64x16xf32>
    tpu.vector_store %arg17[%c0_17, %c0_18], %33 {strides = array<i32>} : memref<64x16xf32, #tpu.memory_space<vmem>>, vector<64x16xf32>,
    %cst_19 = arith.constant dense<0.000000e+00> : vector<64x32xf32>
    %35 = tpu.matmul %33, %10, %cst_19 {dimension_numbers = #tpu.dot_dimension_numbers<[1], [0], [0], [1], [0, 0, 1, 1], [], []>} : vector<64x16xf32>, vector<16x32xf32>, vector<64x32xf32> -> vector<64x32xf32>
    %36 = arith.mulf %35, %2 : vector<64x32xf32>
    %37 = vector.extract_strided_slice %36 {offsets = [0, 0], sizes = [16, 32], strides = [1, 1]} : vector<64x32xf32> to vector<16x32xf32>
    %38 = vector.extract_strided_slice %36 {offsets = [16, 0], sizes = [16, 32], strides = [1, 1]} : vector<64x32xf32> to vector<16x32xf32>
    %39 = arith.addf %37, %38 : vector<16x32xf32>
    %40 = vector.extract_strided_slice %36 {offsets = [32, 0], sizes = [16, 32], strides = [1, 1]} : vector<64x32xf32> to vector<16x32xf32>
    %41 = arith.addf %39, %40 : vector<16x32xf32>
    %42 = vector.extract_strided_slice %36 {offsets = [48, 0], sizes = [16, 32], strides = [1, 1]} : vector<64x32xf32> to vector<16x32xf32>
    %43 = arith.addf %41, %42 : vector<16x32xf32>
    %c0_20 = arith.constant 0 : index
    %c0_21 = arith.constant 0 : index
    %44 = vector.load %arg6[%c0_20, %c0_21] : memref<32x32xf32, #tpu.memory_space<vmem>>, vector<32x32xf32>
    %cst_22 = arith.constant dense<0.000000e+00> : vector<16x32xf32>
    %45 = tpu.matmul %43, %44, %cst_22 {dimension_numbers = #tpu.dot_dimension_numbers<[1], [0], [0], [1], [0, 0, 1, 1], [], []>} : vector<16x32xf32>, vector<32x32xf32>, vector<16x32xf32> -> vector<16x32xf32>
    %c0_23 = arith.constant 0 : index
    %c0_24 = arith.constant 0 : index
    %46 = vector.load %arg7[%c0_23, %c0_24] : memref<1x32xf32, #tpu.memory_space<vmem>>, vector<1x32xf32>
    %47 = vector.broadcast %46 : vector<1x32xf32> to vector<16x32xf32>
    %48 = arith.addf %45, %47 : vector<16x32xf32>
    %49 = arith.addf %0, %48 : vector<16x32xf32>
    %c0_25 = arith.constant 0 : index
    %c0_26 = arith.constant 0 : index
    %50 = vector.load %arg8[%c0_25, %c0_26] : memref<1x32xf32, #tpu.memory_space<vmem>>, vector<1x32xf32>
    %c0_27 = arith.constant 0 : index
    %c0_28 = arith.constant 0 : index
    %51 = vector.load %arg9[%c0_27, %c0_28] : memref<1x32xf32, #tpu.memory_space<vmem>>, vector<1x32xf32>
    %cst_29 = arith.constant dense<0.000000e+00> : vector<16xf32>
    %52 = vector.multi_reduction <add>, %49, %cst_29 [1] : vector<16x32xf32> to vector<16xf32>
    %53 = vector.shape_cast %52 : vector<16xf32> to vector<16x1xf32>
    %cst_30 = arith.constant 3.200000e+01 : f32
    %54 = vector.broadcast %cst_30 : f32 to vector<16x1xf32>
    %55 = arith.divf %53, %54 : vector<16x1xf32>
    %56 = vector.broadcast %55 : vector<16x1xf32> to vector<16x32xf32>
    %57 = arith.subf %49, %56 : vector<16x32xf32>
    %58 = arith.mulf %57, %57 : vector<16x32xf32>
    %cst_31 = arith.constant dense<0.000000e+00> : vector<16xf32>
    %59 = vector.multi_reduction <add>, %58, %cst_31 [1] : vector<16x32xf32> to vector<16xf32>
    %60 = vector.shape_cast %59 : vector<16xf32> to vector<16x1xf32>
    %cst_32 = arith.constant 3.200000e+01 : f32
    %61 = vector.broadcast %cst_32 : f32 to vector<16x1xf32>
    %62 = arith.divf %60, %61 : vector<16x1xf32>
    %63 = vector.broadcast %55 : vector<16x1xf32> to vector<16x32xf32>
    %64 = arith.subf %49, %63 : vector<16x32xf32>
    %cst_33 = arith.constant 9.99999996E-13 : f32
    %65 = vector.broadcast %cst_33 : f32 to vector<16x1xf32>
    %66 = arith.addf %62, %65 : vector<16x1xf32>
    %67 = math.rsqrt %66 : vector<16x1xf32>
    %68 = vector.broadcast %67 : vector<16x1xf32> to vector<16x32xf32>
    %69 = arith.mulf %64, %68 : vector<16x32xf32>
    %70 = vector.broadcast %50 : vector<1x32xf32> to vector<16x32xf32>
    %71 = arith.mulf %69, %70 : vector<16x32xf32>
    %72 = vector.broadcast %51 : vector<1x32xf32> to vector<16x32xf32>
    %73 = arith.addf %71, %72 : vector<16x32xf32>
    %c0_34 = arith.constant 0 : index
    %c0_35 = arith.constant 0 : index
    %74 = vector.load %arg10[%c0_34, %c0_35] : memref<32x128xf32, #tpu.memory_space<vmem>>, vector<32x128xf32>
    %cst_36 = arith.constant dense<0.000000e+00> : vector<16x128xf32>
    %75 = tpu.matmul %73, %74, %cst_36 {dimension_numbers = #tpu.dot_dimension_numbers<[1], [0], [0], [1], [0, 0, 1, 1], [], []>} : vector<16x32xf32>, vector<32x128xf32>, vector<16x128xf32> -> vector<16x128xf32>
    %c0_37 = arith.constant 0 : index
    %c0_38 = arith.constant 0 : index
    %76 = vector.load %arg11[%c0_37, %c0_38] : memref<1x128xf32, #tpu.memory_space<vmem>>, vector<1x128xf32>
    %77 = vector.broadcast %76 : vector<1x128xf32> to vector<16x128xf32>
    %78 = arith.addf %75, %77 : vector<16x128xf32>
    %cst_39 = arith.constant 5.000000e-01 : f32
    %79 = vector.broadcast %cst_39 : f32 to vector<16x128xf32>
    %80 = arith.mulf %79, %78 : vector<16x128xf32>
    %cst_40 = arith.constant 0.707106769 : f32
    %81 = vector.broadcast %cst_40 : f32 to vector<16x128xf32>
    %82 = arith.mulf %78, %81 : vector<16x128xf32>
    %83 = math.absf %82 : vector<16x128xf32>
    %cst_41 = arith.constant 0.327591091 : f32
    %84 = vector.broadcast %cst_41 : f32 to vector<16x128xf32>
    %85 = arith.mulf %84, %83 : vector<16x128xf32>
    %cst_42 = arith.constant 1.000000e+00 : f32
    %86 = vector.broadcast %cst_42 : f32 to vector<16x128xf32>
    %87 = arith.addf %86, %85 : vector<16x128xf32>
    %cst_43 = arith.constant 1.000000e+00 : f32
    %88 = vector.broadcast %cst_43 : f32 to vector<16x128xf32>
    %89 = arith.divf %88, %87 : vector<16x128xf32>
    %cst_44 = arith.constant 1.06140542 : f32
    %90 = vector.broadcast %cst_44 : f32 to vector<16x128xf32>
    %91 = arith.mulf %90, %89 : vector<16x128xf32>
    %cst_45 = arith.constant -1.45315206 : f32
    %92 = vector.broadcast %cst_45 : f32 to vector<16x128xf32>
    %93 = arith.addf %91, %92 : vector<16x128xf32>
    %94 = arith.mulf %93, %89 : vector<16x128xf32>
    %cst_46 = arith.constant 1.42141378 : f32
    %95 = vector.broadcast %cst_46 : f32 to vector<16x128xf32>
    %96 = arith.addf %94, %95 : vector<16x128xf32>
    %97 = arith.mulf %96, %89 : vector<16x128xf32>
    %cst_47 = arith.constant -0.284496725 : f32
    %98 = vector.broadcast %cst_47 : f32 to vector<16x128xf32>
    %99 = arith.addf %97, %98 : vector<16x128xf32>
    %100 = arith.mulf %99, %89 : vector<16x128xf32>
    %cst_48 = arith.constant 0.254829586 : f32
    %101 = vector.broadcast %cst_48 : f32 to vector<16x128xf32>
    %102 = arith.addf %100, %101 : vector<16x128xf32>
    %103 = arith.mulf %102, %89 : vector<16x128xf32>
    %cst_49 = arith.constant 0.000000e+00 : f32
    %104 = vector.broadcast %cst_49 : f32 to vector<16x128xf32>
    %105 = arith.subf %104, %83 : vector<16x128xf32>
    %106 = arith.mulf %105, %83 : vector<16x128xf32>
    %107 = math.exp %106 : vector<16x128xf32>
    %108 = arith.mulf %103, %107 : vector<16x128xf32>
    %cst_50 = arith.constant 1.000000e+00 : f32
    %109 = vector.broadcast %cst_50 : f32 to vector<16x128xf32>
    %110 = arith.subf %109, %108 : vector<16x128xf32>
    %cst_51 = arith.constant 0.000000e+00 : f32
    %111 = vector.broadcast %cst_51 : f32 to vector<16x128xf32>
    %112 = arith.cmpf oge, %82, %111 : vector<16x128xf32>
    %cst_52 = arith.constant 0.000000e+00 : f32
    %113 = vector.broadcast %cst_52 : f32 to vector<16x128xf32>
    %114 = arith.subf %113, %110 : vector<16x128xf32>
    %115 = arith.select %112, %110, %114 : vector<16x128xi1>, vector<16x128xf32>
    %cst_53 = arith.constant 1.000000e+00 : f32
    %116 = vector.broadcast %cst_53 : f32 to vector<16x128xf32>
    %117 = arith.addf %116, %115 : vector<16x128xf32>
    %118 = arith.mulf %80, %117 : vector<16x128xf32>
    %c0_54 = arith.constant 0 : index
    %c0_55 = arith.constant 0 : index
    %119 = vector.load %arg12[%c0_54, %c0_55] : memref<128x32xf32, #tpu.memory_space<vmem>>, vector<128x32xf32>
    %cst_56 = arith.constant dense<0.000000e+00> : vector<16x32xf32>
    %120 = tpu.matmul %118, %119, %cst_56 {dimension_numbers = #tpu.dot_dimension_numbers<[1], [0], [0], [1], [0, 0, 1, 1], [], []>} : vector<16x128xf32>, vector<128x32xf32>, vector<16x32xf32> -> vector<16x32xf32>
    %c0_57 = arith.constant 0 : index
    %c0_58 = arith.constant 0 : index
    %121 = vector.load %arg13[%c0_57, %c0_58] : memref<1x32xf32, #tpu.memory_space<vmem>>, vector<1x32xf32>
    %122 = vector.broadcast %121 : vector<1x32xf32> to vector<16x32xf32>
    %123 = arith.addf %120, %122 : vector<16x32xf32>
    %124 = arith.addf %123, %73 : vector<16x32xf32>
    %c0_59 = arith.constant 0 : index
    %c0_60 = arith.constant 0 : index
    %125 = vector.load %arg14[%c0_59, %c0_60] : memref<1x32xf32, #tpu.memory_space<vmem>>, vector<1x32xf32>
    %c0_61 = arith.constant 0 : index
    %c0_62 = arith.constant 0 : index
    %126 = vector.load %arg15[%c0_61, %c0_62] : memref<1x32xf32, #tpu.memory_space<vmem>>, vector<1x32xf32>
    %cst_63 = arith.constant dense<0.000000e+00> : vector<16xf32>
    %127 = vector.multi_reduction <add>, %124, %cst_63 [1] : vector<16x32xf32> to vector<16xf32>
    %128 = vector.shape_cast %127 : vector<16xf32> to vector<16x1xf32>
    %cst_64 = arith.constant 3.200000e+01 : f32
    %129 = vector.broadcast %cst_64 : f32 to vector<16x1xf32>
    %130 = arith.divf %128, %129 : vector<16x1xf32>
    %131 = vector.broadcast %130 : vector<16x1xf32> to vector<16x32xf32>
    %132 = arith.subf %124, %131 : vector<16x32xf32>
    %133 = arith.mulf %132, %132 : vector<16x32xf32>
    %cst_65 = arith.constant dense<0.000000e+00> : vector<16xf32>
    %134 = vector.multi_reduction <add>, %133, %cst_65 [1] : vector<16x32xf32> to vector<16xf32>
    %135 = vector.shape_cast %134 : vector<16xf32> to vector<16x1xf32>
    %cst_66 = arith.constant 3.200000e+01 : f32
    %136 = vector.broadcast %cst_66 : f32 to vector<16x1xf32>
    %137 = arith.divf %135, %136 : vector<16x1xf32>
    %138 = vector.broadcast %130 : vector<16x1xf32> to vector<16x32xf32>
    %139 = arith.subf %124, %138 : vector<16x32xf32>
    %cst_67 = arith.constant 9.99999996E-13 : f32
    %140 = vector.broadcast %cst_67 : f32 to vector<16x1xf32>
    %141 = arith.addf %137, %140 : vector<16x1xf32>
    %142 = math.rsqrt %141 : vector<16x1xf32>
    %143 = vector.broadcast %142 : vector<16x1xf32> to vector<16x32xf32>
    %144 = arith.mulf %139, %143 : vector<16x32xf32>
    %145 = vector.broadcast %125 : vector<1x32xf32> to vector<16x32xf32>
    %146 = arith.mulf %144, %145 : vector<16x32xf32>
    %147 = vector.broadcast %126 : vector<1x32xf32> to vector<16x32xf32>
    %148 = arith.addf %146, %147 : vector<16x32xf32>
    %c0_68 = arith.constant 0 : index
    %c0_69 = arith.constant 0 : index
    %149 = vector.load %arg16[%c0_68, %c0_69] : memref<16x32xf32, #tpu.memory_space<vmem>>, vector<16x32xf32>
    tpu.vector_store %arg16[%c0_68, %c0_69], %148 {strides = array<i32>} : memref<16x32xf32, #tpu.memory_space<vmem>>, vector<16x32xf32>,
    return
  }
  func.func @transform_0(%arg0: i32) -> (i32, i32) {
    %c0_i32 = arith.constant 0 : i32
    %c0_i32_0 = arith.constant 0 : i32
    %c0_i32_1 = arith.constant 0 : i32
    return %c0_i32, %c0_i32_0 : i32, i32
  }
  func.func @transform_1(%arg0: i32) -> (i32, i32) {
    %c0_i32 = arith.constant 0 : i32
    %c0_i32_0 = arith.constant 0 : i32
    %c0_i32_1 = arith.constant 0 : i32
    return %c0_i32, %c0_i32_0 : i32, i32
  }
  func.func @transform_2(%arg0: i32) -> (i32, i32) {
    %c0_i32 = arith.constant 0 : i32
    %c0_i32_0 = arith.constant 0 : i32
    %c0_i32_1 = arith.constant 0 : i32
    return %c0_i32, %c0_i32_0 : i32, i32
  }
  func.func @transform_3(%arg0: i32) -> (i32, i32) {
    %c0_i32 = arith.constant 0 : i32
    %c0_i32_0 = arith.constant 0 : i32
    %c0_i32_1 = arith.constant 0 : i32
    return %c0_i32, %c0_i32_0 : i32, i32
  }
  func.func @transform_4(%arg0: i32) -> (i32, i32) {
    %c0_i32 = arith.constant 0 : i32
    %c0_i32_0 = arith.constant 0 : i32
    %c0_i32_1 = arith.constant 0 : i32
    return %c0_i32, %c0_i32_0 : i32, i32
  }
  func.func @transform_5(%arg0: i32) -> (i32, i32) {
    %c0_i32 = arith.constant 0 : i32
    %c0_i32_0 = arith.constant 0 : i32
    %c0_i32_1 = arith.constant 0 : i32
    return %c0_i32, %c0_i32_0 : i32, i32
  }
  func.func @transform_6(%arg0: i32) -> (i32, i32) {
    %c0_i32 = arith.constant 0 : i32
    %c0_i32_0 = arith.constant 0 : i32
    %c0_i32_1 = arith.constant 0 : i32
    return %c0_i32, %c0_i32_0 : i32, i32
  }
  func.func @transform_7(%arg0: i32) -> (i32, i32) {
    %c0_i32 = arith.constant 0 : i32
    %c0_i32_0 = arith.constant 0 : i32
    %c0_i32_1 = arith.constant 0 : i32
    return %c0_i32, %c0_i32_0 : i32, i32
  }
  func.func @transform_8(%arg0: i32) -> (i32, i32) {
    %c0_i32 = arith.constant 0 : i32
    %c0_i32_0 = arith.constant 0 : i32
    %c0_i32_1 = arith.constant 0 : i32
    return %c0_i32, %c0_i32_0 : i32, i32
  }
  func.func @transform_9(%arg0: i32) -> (i32, i32) {
    %c0_i32 = arith.constant 0 : i32
    %c0_i32_0 = arith.constant 0 : i32
    %c0_i32_1 = arith.constant 0 : i32
    return %c0_i32, %c0_i32_0 : i32, i32
  }
  func.func @transform_10(%arg0: i32) -> (i32, i32) {
    %c0_i32 = arith.constant 0 : i32
    %c0_i32_0 = arith.constant 0 : i32
    %c0_i32_1 = arith.constant 0 : i32
    return %c0_i32, %c0_i32_0 : i32, i32
  }
  func.func @transform_11(%arg0: i32) -> (i32, i32) {
    %c0_i32 = arith.constant 0 : i32
    %c0_i32_0 = arith.constant 0 : i32
    %c0_i32_1 = arith.constant 0 : i32
    return %c0_i32, %c0_i32_0 : i32, i32
  }
  func.func @transform_12(%arg0: i32) -> (i32, i32) {
    %c0_i32 = arith.constant 0 : i32
    %c0_i32_0 = arith.constant 0 : i32
    %c0_i32_1 = arith.constant 0 : i32
    return %c0_i32, %c0_i32_0 : i32, i32
  }
  func.func @transform_13(%arg0: i32) -> (i32, i32) {
    %c0_i32 = arith.constant 0 : i32
    %c0_i32_0 = arith.constant 0 : i32
    %c0_i32_1 = arith.constant 0 : i32
    return %c0_i32, %c0_i32_0 : i32, i32
  }
  func.func @transform_14(%arg0: i32) -> (i32, i32) {
    %c0_i32 = arith.constant 0 : i32
    %c0_i32_0 = arith.constant 0 : i32
    %c0_i32_1 = arith.constant 0 : i32
    return %c0_i32, %c0_i32_0 : i32, i32
  }
  func.func @transform_15(%arg0: i32) -> (i32, i32) {
    %c0_i32 = arith.constant 0 : i32
    %c0_i32_0 = arith.constant 0 : i32
    %c0_i32_1 = arith.constant 0 : i32
    return %c0_i32, %c0_i32_0 : i32, i32
  }
  func.func @transform_16(%arg0: i32) -> (i32, i32) {
    %c0_i32 = arith.constant 0 : i32
    %c0_i32_0 = arith.constant 0 : i32
    %c0_i32_1 = arith.constant 0 : i32
    return %c0_i32, %c0_i32_0 : i32, i32
  }
}

</mosaic_0001>

<llo_original>
// kernel: encoder_layer.1
$region0: #{encoder_layer.1}
  #allocation0 [shape = 'u32[]', space=smem, size = 0x4, offset = 0x4, fixed_abs, tag = 'smem constant byte address 0x4 - core index']
  #allocation1 [shape = 'u32[72,128]{1,0:T(1,128)}', space=vmem, size = 0x9000, scoped, tag = 'internal scratch']
  %s0 = inlined_call_operand.vmem [shape: f32[16,32], index: 0, kind: input, shape index: {}]
  %s1 = inlined_call_operand.vmem [shape: f32[64,16], index: 1, kind: input, shape index: {}]
  %s2 = inlined_call_operand.vmem [shape: f32[64,32], index: 2, kind: input, shape index: {}]
  %s3 = inlined_call_operand.vmem [shape: f32[32,96], index: 3, kind: input, shape index: {}]
  %s4 = inlined_call_operand.vmem [shape: f32[1,96], index: 4, kind: input, shape index: {}]
  %s5 = inlined_call_operand.vmem [shape: f32[32,32], index: 5, kind: input, shape index: {}]
  %s6 = inlined_call_operand.vmem [shape: f32[1,32], index: 6, kind: input, shape index: {}]
  %s7 = inlined_call_operand.vmem [shape: f32[1,32], index: 7, kind: input, shape index: {}]
  %s8 = inlined_call_operand.vmem [shape: f32[1,32], index: 8, kind: input, shape index: {}]
  %s9 = inlined_call_operand.vmem [shape: f32[32,128], index: 9, kind: input, shape index: {}]
  %s10 = inlined_call_operand.vmem [shape: f32[1,128], index: 10, kind: input, shape index: {}]
  %s11 = inlined_call_operand.vmem [shape: f32[128,32], index: 11, kind: input, shape index: {}]
  %s12 = inlined_call_operand.vmem [shape: f32[1,32], index: 12, kind: input, shape index: {}]
  %s13 = inlined_call_operand.vmem [shape: f32[1,32], index: 13, kind: input, shape index: {}]
  %s14 = inlined_call_operand.vmem [shape: f32[1,32], index: 14, kind: input, shape index: {}]
  %s15 = inlined_call_operand.hbm [shape: f32[16,32], index: 15, kind: output, shape index: {0}]
  %s16 = inlined_call_operand.vmem [shape: f32[64,16], index: 16, kind: output, shape index: {1}]
  %17 = xla_tuple %s15, %s16
  %s18 = sld [smem:[#allocation0]]
  $region78: #{encoder_layer.1} parent=0
    _
  %s20 = ssub.s32 1, %s18
  %s21 = scalar_select 0, %s20, %s18
  $region1: #{encoder_layer.1} parent=0
    #allocation2 [shape = 'u8[8192]{0}', space=vmem, size = 0x2000, scoped, tag = 'output window, operand 0, single buffered']
    #allocation3 [shape = 's32[1]{0}', space=sflag, size = 0x4, scoped, tag = 'scoped memory for encoder_layer.1']
    %22 = vsyncpa [#allocation3], 0
    // Predicated region
    $region2: #{encoder_layer.1} parent=1 // pred_check
      _
    $region3: #{encoder_layer.1} parent=1 // pred_check_branch
      %24 = sbr.rel (0) target = $region5
    $region4: #{encoder_layer.1} parent=1 // pred_region
      _
    $region5: #{encoder_layer.1} parent=1 // pred_fallthru
      _
    // Predicated region
    $region6: #{encoder_layer.1} parent=1 // pred_check
      _
    $region7: #{encoder_layer.1} parent=1 // pred_check_branch
      %26 = sbr.rel (0) target = $region9
    $region8: #{encoder_layer.1} parent=1 // pred_region
      _
    $region9: #{encoder_layer.1} parent=1 // pred_fallthru
      _
    // Predicated region
    $region10: #{encoder_layer.1} parent=1 // pred_check
      _
    $region11: #{encoder_layer.1} parent=1 // pred_check_branch
      %28 = sbr.rel (0) target = $region13
    $region12: #{encoder_layer.1} parent=1 // pred_region
      _
    $region13: #{encoder_layer.1} parent=1 // pred_fallthru
      _
    // Predicated region
    $region14: #{encoder_layer.1} parent=1 // pred_check
      _
    $region15: #{encoder_layer.1} parent=1 // pred_check_branch
      %30 = sbr.rel (0) target = $region17
    $region16: #{encoder_layer.1} parent=1 // pred_region
      _
    $region17: #{encoder_layer.1} parent=1 // pred_fallthru
      _
    // Predicated region
    $region18: #{encoder_layer.1} parent=1 // pred_check
      _
    $region19: #{encoder_layer.1} parent=1 // pred_check_branch
      %32 = sbr.rel (0) target = $region21
    $region20: #{encoder_layer.1} parent=1 // pred_region
      _
    $region21: #{encoder_layer.1} parent=1 // pred_fallthru
      _
    // Predicated region
    $region22: #{encoder_layer.1} parent=1 // pred_check
      _
    $region23: #{encoder_layer.1} parent=1 // pred_check_branch
      %34 = sbr.rel (0) target = $region25
    $region24: #{encoder_layer.1} parent=1 // pred_region
      _
    $region25: #{encoder_layer.1} parent=1 // pred_fallthru
      _
    // Predicated region
    $region26: #{encoder_layer.1} parent=1 // pred_check
      _
    $region27: #{encoder_layer.1} parent=1 // pred_check_branch
      %36 = sbr.rel (0) target = $region29
    $region28: #{encoder_layer.1} parent=1 // pred_region
      _
    $region29: #{encoder_layer.1} parent=1 // pred_fallthru
      _
    // Predicated region
    $region30: #{encoder_layer.1} parent=1 // pred_check
      _
    $region31: #{encoder_layer.1} parent=1 // pred_check_branch
      %38 = sbr.rel (0) target = $region33
    $region32: #{encoder_layer.1} parent=1 // pred_region
      _
    $region33: #{encoder_layer.1} parent=1 // pred_fallthru
      _
    // Predicated region
    $region34: #{encoder_layer.1} parent=1 // pred_check
      _
    $region35: #{encoder_layer.1} parent=1 // pred_check_branch
      %40 = sbr.rel (0) target = $region37
    $region36: #{encoder_layer.1} parent=1 // pred_region
      _
    $region37: #{encoder_layer.1} parent=1 // pred_fallthru
      _
    // Predicated region
    $region38: #{encoder_layer.1} parent=1 // pred_check
      _
    $region39: #{encoder_layer.1} parent=1 // pred_check_branch
      %42 = sbr.rel (0) target = $region41
    $region40: #{encoder_layer.1} parent=1 // pred_region
      _
    $region41: #{encoder_layer.1} parent=1 // pred_fallthru
      _
    // Predicated region
    $region42: #{encoder_layer.1} parent=1 // pred_check
      _
    $region43: #{encoder_layer.1} parent=1 // pred_check_branch
      %44 = sbr.rel (0) target = $region45
    $region44: #{encoder_layer.1} parent=1 // pred_region
      _
    $region45: #{encoder_layer.1} parent=1 // pred_fallthru
      _
    // Predicated region
    $region46: #{encoder_layer.1} parent=1 // pred_check
      _
    $region47: #{encoder_layer.1} parent=1 // pred_check_branch
      %46 = sbr.rel (0) target = $region49
    $region48: #{encoder_layer.1} parent=1 // pred_region
      _
    $region49: #{encoder_layer.1} parent=1 // pred_fallthru
      _
    // Predicated region
    $region50: #{encoder_layer.1} parent=1 // pred_check
      _
    $region51: #{encoder_layer.1} parent=1 // pred_check_branch
      %48 = sbr.rel (0) target = $region53
    $region52: #{encoder_layer.1} parent=1 // pred_region
      _
    $region53: #{encoder_layer.1} parent=1 // pred_fallthru
      _
    // Predicated region
    $region54: #{encoder_layer.1} parent=1 // pred_check
      _
    $region55: #{encoder_layer.1} parent=1 // pred_check_branch
      %50 = sbr.rel (0) target = $region57
    $region56: #{encoder_layer.1} parent=1 // pred_region
      _
    $region57: #{encoder_layer.1} parent=1 // pred_fallthru
      _
    // Predicated region
    $region58: #{encoder_layer.1} parent=1 // pred_check
      _
    $region59: #{encoder_layer.1} parent=1 // pred_check_branch
      %52 = sbr.rel (0) target = $region61
    $region60: #{encoder_layer.1} parent=1 // pred_region
      _
    $region61: #{encoder_layer.1} parent=1 // pred_fallthru
      _
    %v53 = vld [vmem:[%s0] sm:$0xff]
    %v54 = vld [vmem:[%s0 + $0x8] sm:$0xff]
    %v55 = vld [vmem:[%s1] sm:$0xff]
    %v56 = vld [vmem:[%s1 + $0x8] sm:$0xff]
    %v57 = vld [vmem:[%s1 + $0x10] sm:$0xff]
    %v58 = vld [vmem:[%s1 + $0x18] sm:$0xff]
    %v59 = vld [vmem:[%s1 + $0x20] sm:$0xff]
    %v60 = vld [vmem:[%s1 + $0x28] sm:$0xff]
    %v61 = vld [vmem:[%s1 + $0x30] sm:$0xff]
    %v62 = vld [vmem:[%s1 + $0x38] sm:$0xff]
    %v63 = vld [vmem:[%s2] sm:$0xff]
    %v64 = vld [vmem:[%s2 + $0x8] sm:$0xff]
    %v65 = vld [vmem:[%s2 + $0x10] sm:$0xff]
    %v66 = vld [vmem:[%s2 + $0x18] sm:$0xff]
    %v67 = vld [vmem:[%s2 + $0x20] sm:$0xff]
    %v68 = vld [vmem:[%s2 + $0x28] sm:$0xff]
    %v69 = vld [vmem:[%s2 + $0x30] sm:$0xff]
    %v70 = vld [vmem:[%s2 + $0x38] sm:$0xff]
    %v71 = vld [vmem:[%s3] sm:$0xff]
    %v72 = vld [vmem:[%s3 + $0x8] sm:$0xff]
    %v73 = vld [vmem:[%s3 + $0x10] sm:$0xff]
    %v74 = vld [vmem:[%s3 + $0x18] sm:$0xff]
    %v75 = vld [vmem:[%s4] sm:$0x1]
    %v77 = vperm.slane %v75, 0
    %vm79 = vcmask 261120
    %v81 = vsel %vm79, %v53, 0
    %v84 = vsel %vm79, %v54, 0
    %86 = vmatpush.msra.mxu0 0.0
    %87 = vmatpush.msra.mxu0 0.0
    %88 = vmatpush.msra.mxu0 0.0
    %89 = vmatpush.msra.mxu0 0.0
    %90 = vmatpush.msra.mxu0 0.0
    %91 = vmatpush.msra.mxu0 0.0
    %92 = vmatpush.msra.mxu0 0.0
    %93 = vmatpush.msra.mxu0 0.0
    %94 = vmatpush.msra.mxu0 0.0
    %95 = vmatpush.msra.mxu0 0.0
    %96 = vmatpush.msra.mxu0 0.0
    %97 = vmatpush.msra.mxu0 0.0
    %98 = vmatpush.msra.mxu0 %v74
    %99 = vmatpush.msra.mxu0 %v73
    %100 = vmatpush.msra.mxu0 %v72
    %101 = vmatpush.msra.mxu0 %v71
    %102 = vmatmul.f32.gmra.mxu0 %v81
    %v103 = vpop.f32.mrf.mxu0
    %v104 = vadd.f32 %v77, %v103
    %105 = vmatmul.f32.gmra.mxu0 %v84
    %v106 = vpop.f32.mrf.mxu0
    %v107 = vadd.f32 %v77, %v106
    %108 = vdwg.mxu0
    %v109 = vmul.f32 %v104, %v63
    %v110 = vmul.f32 %v107, %v64
    %v111 = vmul.f32 %v104, %v65
    %v112 = vmul.f32 %v107, %v66
    %v113 = vmul.f32 %v104, %v67
    %v114 = vmul.f32 %v107, %v68
    %v115 = vmul.f32 %v104, %v69
    %v116 = vmul.f32 %v107, %v70
    %119 = vrot.lane.b32.xlu0 %v104, 96
    %v120 = vpop.permute.xlu0 %119
    %121 = vrot.lane.b32.xlu0 %v107, 96
    %v122 = vpop.permute.xlu0 %121
    %v124 = vsel %vm79, %v109, 0
    %v127 = vsel %vm79, %v110, 0
    %v130 = vsel %vm79, %v111, 0
    %v133 = vsel %vm79, %v112, 0
    %v136 = vsel %vm79, %v113, 0
    %v139 = vsel %vm79, %v114, 0
    %v142 = vsel %vm79, %v115, 0
    %v145 = vsel %vm79, %v116, 0
    %v147 = vsel %vm79, %v120, 0
    %v149 = vsel %vm79, %v122, 0
    %151 = vmatpush.xpose.msra.mxu0 0.0
    %152 = vmatpush.xpose.msra.mxu0 0.0
    %153 = vmatpush.xpose.msra.mxu0 0.0
    %154 = vmatpush.xpose.msra.mxu0 0.0
    %155 = vmatpush.xpose.msra.mxu0 0.0
    %156 = vmatpush.xpose.msra.mxu0 0.0
    %157 = vmatpush.xpose.msra.mxu0 0.0
    %158 = vmatpush.xpose.msra.mxu0 0.0
    %159 = vmatpush.xpose.msra.mxu0 0.0
    %160 = vmatpush.xpose.msra.mxu0 0.0
    %161 = vmatpush.xpose.msra.mxu0 0.0
    %162 = vmatpush.xpose.msra.mxu0 0.0
    %163 = vmatpush.xpose.msra.mxu0 0.0
    %164 = vmatpush.xpose.msra.mxu0 0.0
    %165 = vmatpush.xpose.msra.mxu0 %v149
    %166 = vmatpush.xpose.msra.mxu0 %v147
    %167 = vmatmul.f32.gmra.mxu0 %v124
    %v168 = vpop.f32.mrf.mxu0
    %v169 = vadd.f32 0.0, %v168
    %170 = vmatmul.f32.gmra.mxu0 %v127
    %v171 = vpop.f32.mrf.mxu0
    %v172 = vadd.f32 0.0, %v171
    %173 = vmatmul.f32.gmra.mxu0 %v130
    %v174 = vpop.f32.mrf.mxu0
    %v175 = vadd.f32 0.0, %v174
    %176 = vmatmul.f32.gmra.mxu0 %v133
    %v177 = vpop.f32.mrf.mxu0
    %v178 = vadd.f32 0.0, %v177
    %179 = vmatmul.f32.gmra.mxu0 %v136
    %v180 = vpop.f32.mrf.mxu0
    %v181 = vadd.f32 0.0, %v180
    %182 = vmatmul.f32.gmra.mxu0 %v139
    %v183 = vpop.f32.mrf.mxu0
    %v184 = vadd.f32 0.0, %v183
    %185 = vmatmul.f32.gmra.mxu0 %v142
    %v186 = vpop.f32.mrf.mxu0
    %v187 = vadd.f32 0.0, %v186
    %188 = vmatmul.f32.gmra.mxu0 %v145
    %v189 = vpop.f32.mrf.mxu0
    %v190 = vadd.f32 0.0, %v189
    %191 = vdwg.mxu0
    %v192 = vmul.f32 %v169, 0.35355338
    %v193 = vmul.f32 %v172, 0.35355338
    %v194 = vmul.f32 %v175, 0.35355338
    %v195 = vmul.f32 %v178, 0.35355338
    %v196 = vmul.f32 %v181, 0.35355338
    %v197 = vmul.f32 %v184, 0.35355338
    %v198 = vmul.f32 %v187, 0.35355338
    %v199 = vmul.f32 %v190, 0.35355338
    %vm200 = vcmp.eq.f32.partialorder %v55, 1.0
    %vm201 = vcmp.eq.f32.partialorder %v56, 1.0
    %vm202 = vcmp.eq.f32.partialorder %v57, 1.0
    %vm203 = vcmp.eq.f32.partialorder %v58, 1.0
    %vm204 = vcmp.eq.f32.partialorder %v59, 1.0
    %vm205 = vcmp.eq.f32.partialorder %v60, 1.0
    %vm206 = vcmp.eq.f32.partialorder %v61, 1.0
    %vm207 = vcmp.eq.f32.partialorder %v62, 1.0
    %v208 = vsel %vm200, -1e+09, %v192
    %v209 = vsel %vm201, -1e+09, %v193
    %v210 = vsel %vm202, -1e+09, %v194
    %v211 = vsel %vm203, -1e+09, %v195
    %v212 = vsel %vm204, -1e+09, %v196
    %v213 = vsel %vm205, -1e+09, %v197
    %v214 = vsel %vm206, -1e+09, %v198
    %v215 = vsel %vm207, -1e+09, %v199
    %vm216 = vcmp.eq.f32.partialorder %v55, 2.0
    %vm217 = vcmp.eq.f32.partialorder %v56, 2.0
    %vm218 = vcmp.eq.f32.partialorder %v57, 2.0
    %vm219 = vcmp.eq.f32.partialorder %v58, 2.0
    %vm220 = vcmp.eq.f32.partialorder %v59, 2.0
    %vm221 = vcmp.eq.f32.partialorder %v60, 2.0
    %vm222 = vcmp.eq.f32.partialorder %v61, 2.0
    %vm223 = vcmp.eq.f32.partialorder %v62, 2.0
    %v224 = vsel %vm216, -inf, %v208
    %v225 = vsel %vm217, -inf, %v209
    %v226 = vsel %vm218, -inf, %v210
    %v227 = vsel %vm219, -inf, %v211
    %v228 = vsel %vm220, -inf, %v212
    %v229 = vsel %vm221, -inf, %v213
    %v230 = vsel %vm222, -inf, %v214
    %v231 = vsel %vm223, -inf, %v215
    %vm232 = vcmask 130048
    %v233 = vsel %vm232, %v224, -inf
    %234 = vmax.xlane.f32.xlu0 %v233
    %v235 = vpop.xlane.xlu0 %234
    %v236 = vsel %vm232, %v225, -inf
    %237 = vmax.xlane.f32.xlu0 %v236
    %v238 = vpop.xlane.xlu0 %237
    %v239 = vsel %vm232, %v226, -inf
    %240 = vmax.xlane.f32.xlu0 %v239
    %v241 = vpop.xlane.xlu0 %240
    %v242 = vsel %vm232, %v227, -inf
    %243 = vmax.xlane.f32.xlu0 %v242
    %v244 = vpop.xlane.xlu0 %243
    %v245 = vsel %vm232, %v228, -inf
    %246 = vmax.xlane.f32.xlu0 %v245
    %v247 = vpop.xlane.xlu0 %246
    %v248 = vsel %vm232, %v229, -inf
    %249 = vmax.xlane.f32.xlu0 %v248
    %v250 = vpop.xlane.xlu0 %249
    %v251 = vsel %vm232, %v230, -inf
    %252 = vmax.xlane.f32.xlu0 %v251
    %v253 = vpop.xlane.xlu0 %252
    %v254 = vsel %vm232, %v231, -inf
    %255 = vmax.xlane.f32.xlu0 %v254
    %v256 = vpop.xlane.xlu0 %255
    %v257 = vsub.f32 %v224, %v235
    %v258 = vsub.f32 %v225, %v238
    %v259 = vsub.f32 %v226, %v241
    %v260 = vsub.f32 %v227, %v244
    %v261 = vsub.f32 %v228, %v247
    %v262 = vsub.f32 %v229, %v250
    %v263 = vsub.f32 %v230, %v253
    %v264 = vsub.f32 %v231, %v256
    %v265 = vmul.f32 %v257, 1.442695
    %v266 = vpow.pop %v265
    %v267 = vmul.f32 %v258, 1.442695
    %v268 = vpow.pop %v267
    %v269 = vmul.f32 %v259, 1.442695
    %v270 = vpow.pop %v269
    %v271 = vmul.f32 %v260, 1.442695
    %v272 = vpow.pop %v271
    %v273 = vmul.f32 %v261, 1.442695
    %v274 = vpow.pop %v273
    %v275 = vmul.f32 %v262, 1.442695
    %v276 = vpow.pop %v275
    %v277 = vmul.f32 %v263, 1.442695
    %v278 = vpow.pop %v277
    %v279 = vmul.f32 %v264, 1.442695
    %v280 = vpow.pop %v279
    %v281 = vsel %vm232, %v266, 0.0
    %282 = vadd.xlane.f32.xlu0 %v281
    %v283 = vpop.xlane.xlu0 %282
    %v284 = vsel %vm232, %v268, 0.0
    %285 = vadd.xlane.f32.xlu0 %v284
    %v286 = vpop.xlane.xlu0 %285
    %v287 = vsel %vm232, %v270, 0.0
    %288 = vadd.xlane.f32.xlu0 %v287
    %v289 = vpop.xlane.xlu0 %288
    %v290 = vsel %vm232, %v272, 0.0
    %291 = vadd.xlane.f32.xlu0 %v290
    %v292 = vpop.xlane.xlu0 %291
    %v293 = vsel %vm232, %v274, 0.0
    %294 = vadd.xlane.f32.xlu0 %v293
    %v295 = vpop.xlane.xlu0 %294
    %v296 = vsel %vm232, %v276, 0.0
    %297 = vadd.xlane.f32.xlu0 %v296
    %v298 = vpop.xlane.xlu0 %297
    %v299 = vsel %vm232, %v278, 0.0
    %300 = vadd.xlane.f32.xlu0 %v299
    %v301 = vpop.xlane.xlu0 %300
    %v302 = vsel %vm232, %v280, 0.0
    %303 = vadd.xlane.f32.xlu0 %v302
    %v304 = vpop.xlane.xlu0 %303
    %v305 = vrcp.pop %v283
    %v306 = vrcp.pop %v286
    %v307 = vrcp.pop %v289
    %v308 = vrcp.pop %v292
    %v309 = vrcp.pop %v295
    %v310 = vrcp.pop %v298
    %v311 = vrcp.pop %v301
    %v312 = vrcp.pop %v304
    %v313 = vmul.f32 %v266, %v305
    %v314 = vmul.f32 %v268, %v306
    %v315 = vmul.f32 %v270, %v307
    %v316 = vmul.f32 %v272, %v308
    %v317 = vmul.f32 %v274, %v309
    %v318 = vmul.f32 %v276, %v310
    %v319 = vmul.f32 %v278, %v311
    %v320 = vmul.f32 %v280, %v312
    %321 = vst.msk [vmem:[%s16] sm:$0xff] %vm232, %v313
    %322 = vst.msk [vmem:[%s16 + $0x8] sm:$0xff] %vm232, %v314
    %323 = vst.msk [vmem:[%s16 + $0x10] sm:$0xff] %vm232, %v315
    %324 = vst.msk [vmem:[%s16 + $0x18] sm:$0xff] %vm232, %v316
    %325 = vst.msk [vmem:[%s16 + $0x20] sm:$0xff] %vm232, %v317
    %326 = vst.msk [vmem:[%s16 + $0x28] sm:$0xff] %vm232, %v318
    %327 = vst.msk [vmem:[%s16 + $0x30] sm:$0xff] %vm232, %v319
    %328 = vst.msk [vmem:[%s16 + $0x38] sm:$0xff] %vm232, %v320
    %329 = vrot.lane.b32.xlu0 %v104, 64
    %v330 = vpop.permute.xlu0 %329
    %331 = vrot.lane.b32.xlu0 %v107, 64
    %v332 = vpop.permute.xlu0 %331
    %v336 = vsel %vm232, %v313, 0
    %v339 = vsel %vm232, %v314, 0
    %v342 = vsel %vm232, %v315, 0
    %v345 = vsel %vm232, %v316, 0
    %v348 = vsel %vm232, %v317, 0
    %v351 = vsel %vm232, %v318, 0
    %v354 = vsel %vm232, %v319, 0
    %v357 = vsel %vm232, %v320, 0
    %359 = vmatpush.msra.mxu0 0.0
    %360 = vmatpush.msra.mxu0 0.0
    %361 = vmatpush.msra.mxu0 0.0
    %362 = vmatpush.msra.mxu0 0.0
    %363 = vmatpush.msra.mxu0 0.0
    %364 = vmatpush.msra.mxu0 0.0
    %365 = vmatpush.msra.mxu0 0.0
    %366 = vmatpush.msra.mxu0 0.0
    %367 = vmatpush.msra.mxu0 0.0
    %368 = vmatpush.msra.mxu0 0.0
    %369 = vmatpush.msra.mxu0 0.0
    %370 = vmatpush.msra.mxu0 0.0
    %371 = vmatpush.msra.mxu0 0.0
    %372 = vmatpush.msra.mxu0 0.0
    %373 = vmatpush.msra.mxu0 %v332
    %374 = vmatpush.msra.mxu0 %v330
    %375 = vmatmul.f32.gmra.mxu0 %v336
    %v376 = vpop.f32.mrf.mxu0
    %v377 = vadd.f32 0.0, %v376
    %378 = vmatmul.f32.gmra.mxu0 %v339
    %v379 = vpop.f32.mrf.mxu0
    %v380 = vadd.f32 0.0, %v379
    %381 = vmatmul.f32.gmra.mxu0 %v342
    %v382 = vpop.f32.mrf.mxu0
    %v383 = vadd.f32 0.0, %v382
    %384 = vmatmul.f32.gmra.mxu0 %v345
    %v385 = vpop.f32.mrf.mxu0
    %v386 = vadd.f32 0.0, %v385
    %387 = vmatmul.f32.gmra.mxu0 %v348
    %v388 = vpop.f32.mrf.mxu0
    %v389 = vadd.f32 0.0, %v388
    %390 = vmatmul.f32.gmra.mxu0 %v351
    %v391 = vpop.f32.mrf.mxu0
    %v392 = vadd.f32 0.0, %v391
    %393 = vmatmul.f32.gmra.mxu0 %v354
    %v394 = vpop.f32.mrf.mxu0
    %v395 = vadd.f32 0.0, %v394
    %396 = vmatmul.f32.gmra.mxu0 %v357
    %v397 = vpop.f32.mrf.mxu0
    %v398 = vadd.f32 0.0, %v397
    %399 = vdwg.mxu0
    %v400 = vmul.f32 %v377, %v63
    %v401 = vmul.f32 %v380, %v64
    %v402 = vmul.f32 %v383, %v65
    %v403 = vmul.f32 %v386, %v66
    %v404 = vmul.f32 %v389, %v67
    %v405 = vmul.f32 %v392, %v68
    %v406 = vmul.f32 %v395, %v69
    %v407 = vmul.f32 %v398, %v70
    %v408 = vadd.f32 %v400, %v402
    %v409 = vadd.f32 %v401, %v403
    %v410 = vadd.f32 %v408, %v404
    %v411 = vadd.f32 %v409, %v405
    %v412 = vadd.f32 %v410, %v406
    %v413 = vadd.f32 %v411, %v407
    %v414 = vld [vmem:[%s5] sm:$0xff]
    %v415 = vld [vmem:[%s5 + $0x8] sm:$0xff]
    %v416 = vld [vmem:[%s5 + $0x10] sm:$0xff]
    %v417 = vld [vmem:[%s5 + $0x18] sm:$0xff]
    %v418 = vld [vmem:[%s6] sm:$0x1]
    %v420 = vperm.slane %v418, 0
    %v423 = vsel %vm79, %v412, 0
    %v426 = vsel %vm79, %v413, 0
    %428 = vmatpush.msra.mxu0 0.0
    %429 = vmatpush.msra.mxu0 0.0
    %430 = vmatpush.msra.mxu0 0.0
    %431 = vmatpush.msra.mxu0 0.0
    %432 = vmatpush.msra.mxu0 0.0
    %433 = vmatpush.msra.mxu0 0.0
    %434 = vmatpush.msra.mxu0 0.0
    %435 = vmatpush.msra.mxu0 0.0
    %436 = vmatpush.msra.mxu0 0.0
    %437 = vmatpush.msra.mxu0 0.0
    %438 = vmatpush.msra.mxu0 0.0
    %439 = vmatpush.msra.mxu0 0.0
    %440 = vmatpush.msra.mxu0 %v417
    %441 = vmatpush.msra.mxu0 %v416
    %442 = vmatpush.msra.mxu0 %v415
    %443 = vmatpush.msra.mxu0 %v414
    %444 = vmatmul.f32.gmra.mxu0 %v423
    %v445 = vpop.f32.mrf.mxu0
    %v446 = vadd.f32 %v420, %v445
    %447 = vmatmul.f32.gmra.mxu0 %v426
    %v448 = vpop.f32.mrf.mxu0
    %v449 = vadd.f32 %v420, %v448
    %450 = vdwg.mxu0
    %v451 = vadd.f32 %v53, %v446
    %v452 = vadd.f32 %v54, %v449
    %v453 = vld [vmem:[%s7] sm:$0x1]
    %v454 = vld [vmem:[%s8] sm:$0x1]
    %v455 = vsel %vm79, %v451, 0.0
    %456 = vadd.xlane.f32.xlu0 %v455
    %v457 = vpop.xlane.xlu0 %456
    %v458 = vsel %vm79, %v452, 0.0
    %459 = vadd.xlane.f32.xlu0 %v458
    %v460 = vpop.xlane.xlu0 %459
    %v461 = vrcp.pop 32.0
    %v462 = vmul.f32 32.0, %v461
    %v463 = vsub.f32 1.0, %v462
    %v464 = vmul.f32 %v461, %v463
    %v465 = vadd.f32 %v461, %v464
    %vm466 = vweird.f32 %v461
    %v467 = vsel %vm466, %v461, %v465
    %v468 = vmul.f32 %v457, %v467
    %v469 = vmul.f32 %v460, %v467
    %v470 = vsub.f32 %v451, %v468
    %v471 = vsub.f32 %v452, %v469
    %v472 = vmul.f32 %v470, %v470
    %v473 = vmul.f32 %v471, %v471
    %v474 = vsel %vm79, %v472, 0.0
    %475 = vadd.xlane.f32.xlu0 %v474
    %v476 = vpop.xlane.xlu0 %475
    %v477 = vsel %vm79, %v473, 0.0
    %478 = vadd.xlane.f32.xlu0 %v477
    %v479 = vpop.xlane.xlu0 %478
    %v480 = vmul.f32 %v476, %v467
    %v481 = vmul.f32 %v479, %v467
    %v482 = vadd.f32 %v480, 1e-12
    %v483 = vadd.f32 %v481, 1e-12
    %v484 = vrsqrt.pop %v482
    %v485 = vmul.f32 %v484, %v482
    %v486 = vmul.f32 %v485, %v484
    %v487 = vmul.f32 0.5, %v486
    %v488 = vsub.f32 1.5, %v487
    %v489 = vmul.f32 %v484, %v488
    %vm490 = vweird.f32 %v482
    %vm491 = vweird.f32 %v484
    %vm492 = vmor %vm490, %vm491
    %v493 = vsel %vm492, %v484, %v489
    %v494 = vrsqrt.pop %v483
    %v495 = vmul.f32 %v494, %v483
    %v496 = vmul.f32 %v495, %v494
    %v497 = vmul.f32 0.5, %v496
    %v498 = vsub.f32 1.5, %v497
    %v499 = vmul.f32 %v494, %v498
    %vm500 = vweird.f32 %v483
    %vm501 = vweird.f32 %v494
    %vm502 = vmor %vm500, %vm501
    %v503 = vsel %vm502, %v494, %v499
    %v504 = vmul.f32 %v470, %v493
    %v505 = vmul.f32 %v471, %v503
    %v507 = vperm.slane %v453, 0
    %v509 = vmul.f32 %v504, %v507
    %v510 = vmul.f32 %v505, %v507
    %v512 = vperm.slane %v454, 0
    %v514 = vadd.f32 %v509, %v512
    %v515 = vadd.f32 %v510, %v512
    %v516 = vld [vmem:[%s9] sm:$0xff]
    %v517 = vld [vmem:[%s9 + $0x8] sm:$0xff]
    %v518 = vld [vmem:[%s9 + $0x10] sm:$0xff]
    %v519 = vld [vmem:[%s9 + $0x18] sm:$0xff]
    %v520 = vld [vmem:[%s10] sm:$0x1]
    %v522 = vperm.slane %v520, 0
    %v525 = vsel %vm79, %v514, 0
    %v528 = vsel %vm79, %v515, 0
    %530 = vmatpush.msra.mxu0 0.0
    %531 = vmatpush.msra.mxu0 0.0
    %532 = vmatpush.msra.mxu0 0.0
    %533 = vmatpush.msra.mxu0 0.0
    %534 = vmatpush.msra.mxu0 0.0
    %535 = vmatpush.msra.mxu0 0.0
    %536 = vmatpush.msra.mxu0 0.0
    %537 = vmatpush.msra.mxu0 0.0
    %538 = vmatpush.msra.mxu0 0.0
    %539 = vmatpush.msra.mxu0 0.0
    %540 = vmatpush.msra.mxu0 0.0
    %541 = vmatpush.msra.mxu0 0.0
    %542 = vmatpush.msra.mxu0 %v519
    %543 = vmatpush.msra.mxu0 %v518
    %544 = vmatpush.msra.mxu0 %v517
    %545 = vmatpush.msra.mxu0 %v516
    %546 = vmatmul.f32.gmra.mxu0 %v525
    %v547 = vpop.f32.mrf.mxu0
    %v548 = vadd.f32 %v522, %v547
    %549 = vmatmul.f32.gmra.mxu0 %v528
    %v550 = vpop.f32.mrf.mxu0
    %v551 = vadd.f32 %v522, %v550
    %552 = vdwg.mxu0
    %v553 = vmul.f32 %v548, 0.5
    %v554 = vmul.f32 %v551, 0.5
    %v555 = vmul.f32 %v548, 0.70710677
    %v556 = vmul.f32 %v551, 0.70710677
    %v557 = vand.u32 2147483647, %v555
    %v558 = vand.u32 2147483647, %v556
    %v559 = vmul.f32 %v557, 0.3275911
    %v560 = vmul.f32 %v558, 0.3275911
    %v561 = vadd.f32 %v559, 1.0
    %v562 = vadd.f32 %v560, 1.0
    %v563 = vrcp.pop %v561
    %v564 = vmul.f32 %v561, %v563
    %v565 = vsub.f32 1.0, %v564
    %v566 = vmul.f32 %v563, %v565
    %v567 = vadd.f32 %v563, %v566
    %vm568 = vweird.f32 %v561
    %vm569 = vweird.f32 %v563
    %vm570 = vmor %vm568, %vm569
    %v571 = vsel %vm570, %v563, %v567
    %v572 = vand.u32 2147483647, %v561
    %vm573 = vcmp.eq.f32.partialorder %v572, 8.507059e+37
    %v574 = vand.u32 %v561, 2147483648
    %v575 = vor.u32 1.1754944e-38, %v574
    %v576 = vsel %vm573, %v575, %v571
    %v577 = vmul.f32 1.0, %v576
    %v578 = vrcp.pop %v562
    %v579 = vmul.f32 %v562, %v578
    %v580 = vsub.f32 1.0, %v579
    %v581 = vmul.f32 %v578, %v580
    %v582 = vadd.f32 %v578, %v581
    %vm583 = vweird.f32 %v562
    %vm584 = vweird.f32 %v578
    %vm585 = vmor %vm583, %vm584
    %v586 = vsel %vm585, %v578, %v582
    %v587 = vand.u32 2147483647, %v562
    %vm588 = vcmp.eq.f32.partialorder %v587, 8.507059e+37
    %v589 = vand.u32 %v562, 2147483648
    %v590 = vor.u32 1.1754944e-38, %v589
    %v591 = vsel %vm588, %v590, %v586
    %v592 = vmul.f32 1.0, %v591
    %v593 = vmul.f32 %v577, 1.0614054
    %v594 = vmul.f32 %v592, 1.0614054
    %v595 = vadd.f32 %v593, -1.4531521
    %v596 = vadd.f32 %v594, -1.4531521
    %v597 = vmul.f32 %v595, %v577
    %v598 = vmul.f32 %v596, %v592
    %v599 = vadd.f32 %v597, 1.4214138
    %v600 = vadd.f32 %v598, 1.4214138
    %v601 = vmul.f32 %v599, %v577
    %v602 = vmul.f32 %v600, %v592
    %v603 = vadd.f32 %v601, -0.28449672
    %v604 = vadd.f32 %v602, -0.28449672
    %v605 = vmul.f32 %v603, %v577
    %v606 = vmul.f32 %v604, %v592
    %v607 = vadd.f32 %v605, 0.2548296
    %v608 = vadd.f32 %v606, 0.2548296
    %v609 = vmul.f32 %v607, %v577
    %v610 = vmul.f32 %v608, %v592
    %v611 = vsub.f32 0.0, %v557
    %v612 = vsub.f32 0.0, %v558
    %v613 = vmul.f32 %v611, %v557
    %v614 = vmul.f32 %v612, %v558
    %v615 = vmul.f32 %v613, 1.442695
    %v616 = vpow.pop %v615
    %v617 = vmul.f32 %v614, 1.442695
    %v618 = vpow.pop %v617
    %v619 = vmul.f32 %v609, %v616
    %v620 = vmul.f32 %v610, %v618
    %v621 = vsub.f32 1.0, %v619
    %v622 = vsub.f32 1.0, %v620
    %vm623 = vcmp.ge.f32.partialorder %v555, 0.0
    %vm624 = vcmp.ge.f32.partialorder %v556, 0.0
    %v625 = vsub.f32 0.0, %v621
    %v626 = vsub.f32 0.0, %v622
    %v627 = vsel %vm623, %v621, %v625
    %v628 = vsel %vm624, %v622, %v626
    %v629 = vadd.f32 %v627, 1.0
    %v630 = vadd.f32 %v628, 1.0
    %v631 = vmul.f32 %v553, %v629
    %v632 = vmul.f32 %v554, %v630
    %v633 = vld [vmem:[%s11] sm:$0xff]
    %v634 = vld [vmem:[%s11 + $0x8] sm:$0xff]
    %v635 = vld [vmem:[%s11 + $0x10] sm:$0xff]
    %v636 = vld [vmem:[%s11 + $0x18] sm:$0xff]
    %v637 = vld [vmem:[%s11 + $0x20] sm:$0xff]
    %v638 = vld [vmem:[%s11 + $0x28] sm:$0xff]
    %v639 = vld [vmem:[%s11 + $0x30] sm:$0xff]
    %v640 = vld [vmem:[%s11 + $0x38] sm:$0xff]
    %v641 = vld [vmem:[%s11 + $0x40] sm:$0xff]
    %v642 = vld [vmem:[%s11 + $0x48] sm:$0xff]
    %v643 = vld [vmem:[%s11 + $0x50] sm:$0xff]
    %v644 = vld [vmem:[%s11 + $0x58] sm:$0xff]
    %v645 = vld [vmem:[%s11 + $0x60] sm:$0xff]
    %v646 = vld [vmem:[%s11 + $0x68] sm:$0xff]
    %v647 = vld [vmem:[%s11 + $0x70] sm:$0xff]
    %v648 = vld [vmem:[%s11 + $0x78] sm:$0xff]
    %v649 = vld [vmem:[%s12] sm:$0x1]
    %v651 = vperm.slane %v649, 0
    %653 = vmatpush.msra.mxu0 %v648
    %654 = vmatpush.msra.mxu0 %v647
    %655 = vmatpush.msra.mxu0 %v646
    %656 = vmatpush.msra.mxu0 %v645
    %657 = vmatpush.msra.mxu0 %v644
    %658 = vmatpush.msra.mxu0 %v643
    %659 = vmatpush.msra.mxu0 %v642
    %660 = vmatpush.msra.mxu0 %v641
    %661 = vmatpush.msra.mxu0 %v640
    %662 = vmatpush.msra.mxu0 %v639
    %663 = vmatpush.msra.mxu0 %v638
    %664 = vmatpush.msra.mxu0 %v637
    %665 = vmatpush.msra.mxu0 %v636
    %666 = vmatpush.msra.mxu0 %v635
    %667 = vmatpush.msra.mxu0 %v634
    %668 = vmatpush.msra.mxu0 %v633
    %669 = vmatmul.f32.gmra.mxu0 %v631
    %v670 = vpop.f32.mrf.mxu0
    %v671 = vadd.f32 %v651, %v670
    %672 = vmatmul.f32.gmra.mxu0 %v632
    %v673 = vpop.f32.mrf.mxu0
    %v674 = vadd.f32 %v651, %v673
    %675 = vdwg.mxu0
    %v676 = vadd.f32 %v671, %v514
    %v677 = vadd.f32 %v674, %v515
    %v678 = vld [vmem:[%s13] sm:$0x1]
    %v679 = vld [vmem:[%s14] sm:$0x1]
    %v680 = vsel %vm79, %v676, 0.0
    %681 = vadd.xlane.f32.xlu0 %v680
    %v682 = vpop.xlane.xlu0 %681
    %v683 = vsel %vm79, %v677, 0.0
    %684 = vadd.xlane.f32.xlu0 %v683
    %v685 = vpop.xlane.xlu0 %684
    %v686 = vmul.f32 %v682, %v467
    %v687 = vmul.f32 %v685, %v467
    %v688 = vsub.f32 %v676, %v686
    %v689 = vsub.f32 %v677, %v687
    %v690 = vmul.f32 %v688, %v688
    %v691 = vmul.f32 %v689, %v689
    %v692 = vsel %vm79, %v690, 0.0
    %693 = vadd.xlane.f32.xlu0 %v692
    %v694 = vpop.xlane.xlu0 %693
    %v695 = vsel %vm79, %v691, 0.0
    %696 = vadd.xlane.f32.xlu0 %v695
    %v697 = vpop.xlane.xlu0 %696
    %v698 = vmul.f32 %v694, %v467
    %v699 = vmul.f32 %v697, %v467
    %v700 = vadd.f32 %v698, 1e-12
    %v701 = vadd.f32 %v699, 1e-12
    %v702 = vrsqrt.pop %v700
    %v703 = vmul.f32 %v702, %v700
    %v704 = vmul.f32 %v703, %v702
    %v705 = vmul.f32 0.5, %v704
    %v706 = vsub.f32 1.5, %v705
    %v707 = vmul.f32 %v702, %v706
    %vm708 = vweird.f32 %v700
    %vm709 = vweird.f32 %v702
    %vm710 = vmor %vm708, %vm709
    %v711 = vsel %vm710, %v702, %v707
    %v712 = vrsqrt.pop %v701
    %v713 = vmul.f32 %v712, %v701
    %v714 = vmul.f32 %v713, %v712
    %v715 = vmul.f32 0.5, %v714
    %v716 = vsub.f32 1.5, %v715
    %v717 = vmul.f32 %v712, %v716
    %vm718 = vweird.f32 %v701
    %vm719 = vweird.f32 %v712
    %vm720 = vmor %vm718, %vm719
    %v721 = vsel %vm720, %v712, %v717
    %v722 = vmul.f32 %v688, %v711
    %v723 = vmul.f32 %v689, %v721
    %v725 = vperm.slane %v678, 0
    %v727 = vmul.f32 %v722, %v725
    %v728 = vmul.f32 %v723, %v725
    %v730 = vperm.slane %v679, 0
    %v732 = vadd.f32 %v727, %v730
    %v733 = vadd.f32 %v728, %v730
    %734 = vst.msk [vmem:[#allocation2] sm:$0xff] %vm79, %v732
    %735 = vst.msk [vmem:[#allocation2 + $0x8] sm:$0xff] %vm79, %v733
    // Predicated region
    $region62: #{encoder_layer.1} parent=1 // pred_check
      _
    $region63: #{encoder_layer.1} parent=1 // pred_check_branch
      %737 = sbr.rel (0) target = $region65
    $region64: #{encoder_layer.1} parent=1 // pred_region
      %739 = vsyncadd [#allocation3], 0
      %s740 = sshll.u32 [#allocation2], 4
      %s741 = int_to_ptr.vmem [resolvable:$true] %s740
      %s742 = sshll.u32 %s15, 4
      %s743 = int_to_ptr.hbm [resolvable:$true] %s742
      %748 = dma.vmem_to_hbm [thread:$0]  %s741, 256, %s743, [#allocation3], 128, 128, 8
    $region65: #{encoder_layer.1} parent=1 // pred_fallthru
      _
    // Predicated region
    $region66: #{encoder_layer.1} parent=1 // pred_check
      _
    $region67: #{encoder_layer.1} parent=1 // pred_check_branch
      %750 = sbr.rel (0) target = $region69
    $region68: #{encoder_layer.1} parent=1 // pred_region
      _
    $region69: #{encoder_layer.1} parent=1 // pred_fallthru
      _
    // Predicated region
    $region70: #{encoder_layer.1} parent=1 // pred_check
      _
    $region71: #{encoder_layer.1} parent=1 // pred_check_branch
      %752 = sbr.rel (0) target = $region73
    $region72: #{encoder_layer.1} parent=1 // pred_region
      %754 = dma.done [#allocation3], 256
    $region73: #{encoder_layer.1} parent=1 // pred_fallthru
      _
    // Predicated region
    $region74: #{encoder_layer.1} parent=1 // pred_check
      _
    $region75: #{encoder_layer.1} parent=1 // pred_check_branch
      %756 = sbr.rel (0) target = $region77
    $region76: #{encoder_layer.1} parent=1 // pred_region
      _
    $region77: #{encoder_layer.1} parent=1 // pred_fallthru
      _
    %757 = vsyncpa [#allocation3], 1

</llo_original>
